<compile_context>
chip_gen: v7x
topology: tpu7x:2x2x1
jax: 0.10.0
libtpu: 0.0.40
codegen_flags: <defaults>
</compile_context>

<pallas_src>
import functools

import jax
import jax.numpy as jnp
from jax.experimental import pallas as pl
from jax.experimental.pallas import tpu as pltpu

_BN_EPS = 1e-5
_VMEM_LIMIT = 32 * 1024 * 1024      # safe scoped-VMEM cap on v5e / v6e / v7x
_VMEM_BUDGET = 20 * 1024 * 1024     # target working set when picking batch tile


def _round_up(n, m):
    return (n + m - 1) // m * m


def _pad2d(a, rows, cols):
    pr, pc = rows - a.shape[0], cols - a.shape[1]
    if pr or pc:
        a = jnp.pad(a, ((0, pr), (0, pc)))
    return a


# ---------------- pass 1: fc1 + ReLU + per-feature sum / sum-of-squares ----------------
def _stats_kernel(x_ref, w1_ref, pvec_ref, stats_ref, *, tb, valid_rows, need_mask):
    i = pl.program_id(0)

    @pl.when(i == 0)
    def _init():
        stats_ref[...] = jnp.zeros_like(stats_ref)

    h = jnp.dot(x_ref[...], w1_ref[...], preferred_element_type=jnp.float32)
    h = jnp.maximum(h + pvec_ref[0:1, :], 0.0)          # fc1 bias + ReLU (f32)

    if need_mask:                                        # zero out padded batch rows
        row = jax.lax.broadcasted_iota(jnp.int32, (tb, 1), 0) + i * tb
        h = jnp.where(row < valid_rows, h, 0.0)

    # batch-axis reductions done as MXU matmuls (ones-vector @ h) instead of XLU sums
    ones_row = jnp.ones((1, tb), jnp.float32)
    stats_ref[0:1, :] += jnp.dot(ones_row, h, preferred_element_type=jnp.float32)
    stats_ref[1:2, :] += jnp.dot(ones_row, h * h, preferred_element_type=jnp.float32)


# -------- pass 2: fc1 + ReLU (recompute) + BN apply + fc2 + L2 normalize ------
def _apply_kernel(x_ref, w1_ref, w2_ref, pvec_ref, stats_ref, o_ref, *, inv_b, mxu_dtype):
    h = jnp.dot(x_ref[...], w1_ref[...], preferred_element_type=jnp.float32)
    h = jnp.maximum(h + pvec_ref[0:1, :], 0.0)

    # fold batch statistics + gamma/beta into one scale/shift FMA
    mean = stats_ref[0:1, :] * inv_b
    var = jnp.maximum(stats_ref[1:2, :] * inv_b - mean * mean, 0.0)   # clamp cancellation
    scale = pvec_ref[1:2, :] * jax.lax.rsqrt(var + _BN_EPS)
    shift = pvec_ref[2:3, :] - mean * scale
    h_bn = h * scale + shift

    y = jnp.dot(h_bn.astype(mxu_dtype), w2_ref[...], preferred_element_type=jnp.float32)
    y = y + pvec_ref[3:4, :]

    # L2 normalize along features (bare division in the reference -> y * rsqrt(sum y^2))
    ssq = jnp.sum(y * y, axis=1, keepdims=True)
    o_ref[...] = (y * jax.lax.rsqrt(ssq)).astype(o_ref.dtype)


def projector_forward(x, w1, b1, gamma, beta, w2, b2, *,
                      mxu_dtype=jnp.bfloat16, max_batch_tile=512):
    """x: [B, D_in]; w1: [D_in, J]; w2: [J, J]; b1/gamma/beta/b2: [J]."""
    B, D_in = x.shape
    J = w1.shape[1]
    Dp = _round_up(D_in, 128)
    Jp = _round_up(J, 128)

    mxu_bytes = jnp.dtype(mxu_dtype).itemsize
    row_align = 16 if mxu_bytes < 4 else 8

    # --- choose batch tile from a conservative VMEM budget (weights resident) ---
    resident = (Dp * Jp + Jp * Jp) * mxu_bytes + 2 * 8 * Jp * 4       # w1, w2, pvec, stats
    per_row = 2 * (Dp * mxu_bytes + Jp * 4) + (Dp + 4 * Jp) * 4       # dbl-buf x/out + live f32
    tb = max(row_align, (_VMEM_BUDGET - resident) // per_row)
    tb = min(int(tb), int(max_batch_tile), _round_up(B, row_align))
    tb = max(row_align, (tb // row_align) * row_align)
    Bp = _round_up(B, tb)
    nb = Bp // tb

    # --- pad to lane-dense 128-aligned features, tile-aligned batch ---
    xp = _pad2d(x, Bp, Dp).astype(mxu_dtype)
    w1p = _pad2d(w1, Dp, Jp).astype(mxu_dtype)
    w2p = _pad2d(w2, Jp, Jp).astype(mxu_dtype)

    # fuse the four (J,) vectors into a single (8, Jp) f32 block: [b1, gamma, beta, b2]
    pvec = jnp.zeros((8, Jp), jnp.float32)
    pvec = pvec.at[0, :J].set(b1.astype(jnp.float32))
    pvec = pvec.at[1, :J].set(gamma.astype(jnp.float32))
    pvec = pvec.at[2, :J].set(beta.astype(jnp.float32))
    pvec = pvec.at[3, :J].set(b2.astype(jnp.float32))

    # ---- pass 1: global batch statistics (grid axis is a reduction -> "arbitrary") ----
    stats = pl.pallas_call(
        functools.partial(_stats_kernel, tb=tb, valid_rows=B, need_mask=(Bp != B)),
        out_shape=jax.ShapeDtypeStruct((8, Jp), jnp.float32),
        grid=(nb,),
        in_specs=[
            pl.BlockSpec((tb, Dp), lambda i: (i, 0)),
            pl.BlockSpec((Dp, Jp), lambda i: (0, 0)),
            pl.BlockSpec((8, Jp), lambda i: (0, 0)),
        ],
        out_specs=pl.BlockSpec((8, Jp), lambda i: (0, 0)),
        compiler_params=pltpu.CompilerParams(
            dimension_semantics=("arbitrary",),
            vmem_limit_bytes=_VMEM_LIMIT),
    )(xp, w1p, pvec)

    # ---- pass 2: BN apply + fc2 + L2 normalize (batch axis "parallel" for megacore) ----
    out = pl.pallas_call(
        functools.partial(_apply_kernel, inv_b=1.0 / B, mxu_dtype=mxu_dtype),
        out_shape=jax.ShapeDtypeStruct((Bp, Jp), jnp.float32),
        grid=(nb,),
        in_specs=[
            pl.BlockSpec((tb, Dp), lambda i: (i, 0)),
            pl.BlockSpec((Dp, Jp), lambda i: (0, 0)),
            pl.BlockSpec((Jp, Jp), lambda i: (0, 0)),
            pl.BlockSpec((8, Jp), lambda i: (0, 0)),
            pl.BlockSpec((8, Jp), lambda i: (0, 0)),
        ],
        out_specs=pl.BlockSpec((tb, Jp), lambda i: (i, 0)),
        compiler_params=pltpu.CompilerParams(
            dimension_semantics=("parallel",),
            vmem_limit_bytes=_VMEM_LIMIT),
    )(xp, w1p, w2p, pvec, stats)

    return out[:B, :J]


def projector_reference(x, w1, b1, gamma, beta, w2, b2):
    h = jnp.maximum(x @ w1 + b1, 0.0)
    mean = jnp.mean(h, axis=0, keepdims=True)
    var = jnp.mean((h - mean) ** 2, axis=0, keepdims=True)
    h_bn = (h - mean) / jnp.sqrt(var + _BN_EPS) * gamma + beta
    y = h_bn @ w2 + b2
    return y / jnp.sqrt(jnp.sum(y * y, axis=1, keepdims=True))


def init_params(key, input_space, joint_space):
    k1, k2, k3, k4 = jax.random.split(key, 4)
    # same bounds as nn.Linear's default init; weights stored [in, out]
    bound1 = 1.0 / (input_space ** 0.5)
    bound2 = 1.0 / (joint_space ** 0.5)
    w1 = jax.random.uniform(k1, (input_space, joint_space), jnp.float32, -bound1, bound1)
    b1 = jax.random.uniform(k2, (joint_space,), jnp.float32, -bound1, bound1)
    w2 = jax.random.uniform(k3, (joint_space, joint_space), jnp.float32, -bound2, bound2)
    b2 = jax.random.uniform(k4, (joint_space,), jnp.float32, -bound2, bound2)
    gamma = jnp.ones((joint_space,), jnp.float32)    # BatchNorm1d weight init
    beta = jnp.zeros((joint_space,), jnp.float32)    # BatchNorm1d bias init
    return w1, b1, gamma, beta, w2, b2


if __name__ == "__main__":
    batch, input_space, joint_space = 64, 32, 32

    key = jax.random.PRNGKey(0)
    kx, kp = jax.random.split(key)
    x = jax.random.normal(kx, (batch, input_space), jnp.float32)
    params = init_params(kp, input_space, joint_space)

    # small batch tile so the demo exercises a 4-step batch grid
    out = projector_forward(x, *params, max_batch_tile=16)
    out = jax.block_until_ready(out)

    ref = projector_reference(x, *params)
    assert out.shape == (batch, joint_space)
    assert bool(jnp.all(jnp.isfinite(out)))
    max_err = float(jnp.max(jnp.abs(out - ref)))
    assert max_err < 5e-2, f"mismatch vs reference: {max_err}"
    print("KERNEL_OK")
</pallas_src>

<mosaic_0001>
module attributes {stable_mosaic.version = 11 : i64} {
  func.func @_stats_kernel(%arg0: i32, %arg1: memref<16x128xbf16, #tpu.memory_space<vmem>>, %arg2: memref<128x128xbf16, #tpu.memory_space<vmem>>, %arg3: memref<8x128xf32, #tpu.memory_space<vmem>>, %arg4: memref<8x128xf32, #tpu.memory_space<vmem>>) attributes {dimension_semantics = [#tpu.dimension_semantics<arbitrary>], iteration_bounds = array<i64: 4>, scalar_prefetch = 0 : i64, scratch_operands = 0 : i64, tpu.core_type = #tpu.core_type<tc>, window_params = [{transform_indices = @transform_0, window_bounds = array<i64: 16, 128>}, {pipeline_mode = #tpu.pipeline_mode<synchronous>, transform_indices = @transform_1, window_bounds = array<i64: 128, 128>}, {pipeline_mode = #tpu.pipeline_mode<synchronous>, transform_indices = @transform_2, window_bounds = array<i64: 8, 128>}, {pipeline_mode = #tpu.pipeline_mode<synchronous>, transform_indices = @transform_3, window_bounds = array<i64: 8, 128>}]} {
    %c0_i32 = arith.constant 0 : i32
    %0 = arith.cmpi eq, %arg0, %c0_i32 : i32
    %1 = arith.extui %0 : i1 to i32
    %c0_i32_0 = arith.constant 0 : i32
    %2 = arith.cmpi ne, %1, %c0_i32_0 : i32
    scf.if %2 {
      %cst_17 = arith.constant 0.000000e+00 : f32
      %21 = vector.broadcast %cst_17 : f32 to vector<8x128xf32>
      %c0_18 = arith.constant 0 : index
      %c0_19 = arith.constant 0 : index
      %22 = vector.load %arg4[%c0_18, %c0_19] : memref<8x128xf32, #tpu.memory_space<vmem>>, vector<8x128xf32>
      tpu.vector_store %arg4[%c0_18, %c0_19], %21 {strides = array<i32>} : memref<8x128xf32, #tpu.memory_space<vmem>>, vector<8x128xf32>,
    } else {
    }
    %c0 = arith.constant 0 : index
    %c0_1 = arith.constant 0 : index
    %3 = vector.load %arg1[%c0, %c0_1] : memref<16x128xbf16, #tpu.memory_space<vmem>>, vector<16x128xbf16>
    %c0_2 = arith.constant 0 : index
    %c0_3 = arith.constant 0 : index
    %4 = vector.load %arg2[%c0_2, %c0_3] : memref<128x128xbf16, #tpu.memory_space<vmem>>, vector<128x128xbf16>
    %cst = arith.constant dense<0.000000e+00> : vector<16x128xf32>
    %5 = tpu.matmul %3, %4, %cst {dimension_numbers = #tpu.dot_dimension_numbers<[1], [0], [0], [1], [0, 0, 1, 1], [], []>} : vector<16x128xbf16>, vector<128x128xbf16>, vector<16x128xf32> -> vector<16x128xf32>
    %c0_4 = arith.constant 0 : index
    %c0_5 = arith.constant 0 : index
    %6 = vector.load %arg3[%c0_4, %c0_5] : memref<8x128xf32, #tpu.memory_space<vmem>>, vector<1x128xf32>
    %7 = vector.broadcast %6 : vector<1x128xf32> to vector<16x128xf32>
    %8 = arith.addf %5, %7 : vector<16x128xf32>
    %cst_6 = arith.constant 0.000000e+00 : f32
    %9 = vector.broadcast %cst_6 : f32 to vector<16x128xf32>
    %10 = arith.maximumf %8, %9 : vector<16x128xf32>
    %cst_7 = arith.constant 1.000000e+00 : f32
    %11 = vector.broadcast %cst_7 : f32 to vector<1x16xf32>
    %c0_8 = arith.constant 0 : index
    %c0_9 = arith.constant 0 : index
    %12 = vector.load %arg4[%c0_8, %c0_9] : memref<8x128xf32, #tpu.memory_space<vmem>>, vector<1x128xf32>
    %cst_10 = arith.constant dense<0.000000e+00> : vector<1x128xf32>
    %13 = tpu.matmul %11, %10, %cst_10 {dimension_numbers = #tpu.dot_dimension_numbers<[1], [0], [0], [1], [0, 0, 1, 1], [], []>} : vector<1x16xf32>, vector<16x128xf32>, vector<1x128xf32> -> vector<1x128xf32>
    %14 = arith.addf %12, %13 : vector<1x128xf32>
    %c0_11 = arith.constant 0 : index
    %c0_12 = arith.constant 0 : index
    %15 = vector.load %arg4[%c0_11, %c0_12] : memref<8x128xf32, #tpu.memory_space<vmem>>, vector<1x128xf32>
    tpu.vector_store %arg4[%c0_11, %c0_12], %14 {strides = array<i32>} : memref<8x128xf32, #tpu.memory_space<vmem>>, vector<1x128xf32>,
    %c1 = arith.constant 1 : index
    %c0_13 = arith.constant 0 : index
    %16 = vector.load %arg4[%c1, %c0_13] : memref<8x128xf32, #tpu.memory_space<vmem>>, vector<1x128xf32>
    %17 = arith.mulf %10, %10 : vector<16x128xf32>
    %cst_14 = arith.constant dense<0.000000e+00> : vector<1x128xf32>
    %18 = tpu.matmul %11, %17, %cst_14 {dimension_numbers = #tpu.dot_dimension_numbers<[1], [0], [0], [1], [0, 0, 1, 1], [], []>} : vector<1x16xf32>, vector<16x128xf32>, vector<1x128xf32> -> vector<1x128xf32>
    %19 = arith.addf %16, %18 : vector<1x128xf32>
    %c1_15 = arith.constant 1 : index
    %c0_16 = arith.constant 0 : index
    %20 = vector.load %arg4[%c1_15, %c0_16] : memref<8x128xf32, #tpu.memory_space<vmem>>, vector<1x128xf32>
    tpu.vector_store %arg4[%c1_15, %c0_16], %19 {strides = array<i32>} : memref<8x128xf32, #tpu.memory_space<vmem>>, vector<1x128xf32>,
    return
  }
  func.func @transform_0(%arg0: i32) -> (i32, i32) {
    %c0_i32 = arith.constant 0 : i32
    %c0_i32_0 = arith.constant 0 : i32
    return %arg0, %c0_i32 : i32, i32
  }
  func.func @transform_1(%arg0: i32) -> (i32, i32) {
    %c0_i32 = arith.constant 0 : i32
    %c0_i32_0 = arith.constant 0 : i32
    %c0_i32_1 = arith.constant 0 : i32
    return %c0_i32, %c0_i32_0 : i32, i32
  }
  func.func @transform_2(%arg0: i32) -> (i32, i32) {
    %c0_i32 = arith.constant 0 : i32
    %c0_i32_0 = arith.constant 0 : i32
    %c0_i32_1 = arith.constant 0 : i32
    return %c0_i32, %c0_i32_0 : i32, i32
  }
  func.func @transform_3(%arg0: i32) -> (i32, i32) {
    %c0_i32 = arith.constant 0 : i32
    %c0_i32_0 = arith.constant 0 : i32
    %c0_i32_1 = arith.constant 0 : i32
    return %c0_i32, %c0_i32_0 : i32, i32
  }
}

</mosaic_0001>

<llo_original>
// kernel: tpu_custom_call.1
$region0: #{tpu_custom_call.1}
  #allocation0 [shape = 'u32[]', space=smem, size = 0x4, offset = 0x4, fixed_abs, tag = 'smem constant byte address 0x4 - core index']
  #allocation1 [shape = 'u32[144,128]{1,0:T(1,128)}', space=vmem, size = 0x12000, scoped, tag = 'internal scratch']
  %s0 = inlined_call_operand.hbm [shape: bf16[64,128], index: 0, kind: input, shape index: {}]
  %s1 = inlined_call_operand.hbm [shape: bf16[128,128], index: 1, kind: input, shape index: {}]
  %s2 = inlined_call_operand.hbm [shape: f32[8,128], index: 2, kind: input, shape index: {}]
  %s3 = inlined_call_operand.hbm [shape: f32[8,128], index: 3, kind: output, shape index: {}]
  %s4 = sld [smem:[#allocation0]]
  $region61: #{tpu_custom_call.1} parent=0
    _
  %s6 = ssub.s32 1, %s4
  %s7 = scalar_select 0, %s6, %s4
  $region1: #{tpu_custom_call.1} parent=0
    #allocation2 [shape = 'u8[8192]{0}', space=vmem, size = 0x2000, scoped, tag = 'input window, operand 0']
    #allocation3 [shape = 's32[2]{0}', space=sflag, size = 0x8, scoped, tag = 'scoped memory for tpu_custom_call.1']
    #allocation4 [shape = 's32[2]{0}', space=sflag, size = 0x8, scoped, tag = 'scoped memory for tpu_custom_call.1']
    #allocation5 [shape = 'u8[32768]{0}', space=vmem, size = 0x8000, scoped, tag = 'input window, operand 1, single buffered']
    #allocation6 [shape = 's32[1]{0}', space=sflag, size = 0x4, scoped, tag = 'scoped memory for tpu_custom_call.1']
    #allocation7 [shape = 'u8[4096]{0}', space=vmem, size = 0x1000, scoped, tag = 'input window, operand 2, single buffered']
    #allocation8 [shape = 'u8[4096]{0}', space=vmem, size = 0x1000, scoped, tag = 'output window, operand 0, single buffered']
    %8 = vsyncpa [#allocation3], 0
    %s9 = scalar_lea.sflag [#allocation3], 1
    %10 = vsyncpa %s9, 0
    %11 = vsyncpa [#allocation6], 0
    %12 = vsyncpa [#allocation4], 0
    loop: start=0, step=1, limit=6
    $region2: #{tpu_custom_call.1} parent=1 // loop_pre_header
      _
    $region3: #{tpu_custom_call.1} parent=1 // loop_header
      %s14 = sphi 0, %s18
      %p15 = scmp.ge.s32.totalorder %s14, 6
      %s24 = sphi 0, %s26
      %s27 = sphi 0, %s24
      %s28 = sphi 0, %s27
      %s44 = sphi 0, %s28
      %s48 = sphi 0, %s48
      %s50 = sphi 0, %s48
      %s51 = sphi 0, %s50
      %s65 = sphi 0, %s51
      %s69 = sphi 0, %s69
      %s71 = sphi 0, %s69
      %s72 = sphi 0, %s71
      %s86 = sphi 0, %s72
      %s90 = sphi 0, %s90
      %s92 = sphi 0, %s90
      %s93 = sphi 0, %s92
      %s107 = sphi 0, %s93
    $region4: #{tpu_custom_call.1} parent=1 // loop_header_branch
      %17 = sbr.rel (%p15) target = $region8
    $region5: #{tpu_custom_call.1} parent=1 // loop_body
      %s19 = ssub.s32 %s14, 1
      %s20 = ssub.s32 %s14, 2
      %s21 = sadd.s32 %s14, 1
      %s22 = ssub.s32 %s14, %s21
      %p23 = scmp.eq.s32.totalorder %s22, 0
      %s25 = sadd.s32 %s24, 1
      %s26 = scalar_select %p23, %s24, %s25
      %p29 = pneg %p23
      %p30 = scmp.eq.s32.totalorder %s14, 3
      %p31 = por %p29, %p30
      %p32 = scmp.ne.s32.totalorder %s24, %s27
      %p33 = scmp.eq.s32.totalorder %s14, 0
      %p34 = por %p32, %p33
      %p35 = scmp.ne.s32.totalorder %s24, %s27
      %p36 = scmp.eq.s32.totalorder %s19, 3
      %p37 = por %p35, %p36
      %p38 = scmp.ne.s32.totalorder %s27, %s28
      %p39 = scmp.eq.s32.totalorder %s19, 0
      %p40 = por %p38, %p39
      %p41 = scmp.ne.s32.totalorder %s27, %s28
      %p42 = scmp.eq.s32.totalorder %s20, 3
      %p43 = por %p41, %p42
      %p45 = scmp.ne.s32.totalorder %s28, %s44
      %p46 = scmp.eq.s32.totalorder %s20, 0
      %p47 = por %p45, %p46
      %s49 = sadd.s32 %s48, 1
      %p52 = scmp.eq.s32.totalorder %s14, 3
      %p53 = scmp.ne.s32.totalorder %s48, %s50
      %p54 = scmp.eq.s32.totalorder %s14, 0
      %p55 = por %p53, %p54
      %p56 = scmp.ne.s32.totalorder %s48, %s50
      %p57 = scmp.eq.s32.totalorder %s19, 3
      %p58 = por %p56, %p57
      %p59 = scmp.ne.s32.totalorder %s50, %s51
      %p60 = scmp.eq.s32.totalorder %s19, 0
      %p61 = por %p59, %p60
      %p62 = scmp.ne.s32.totalorder %s50, %s51
      %p63 = scmp.eq.s32.totalorder %s20, 3
      %p64 = por %p62, %p63
      %p66 = scmp.ne.s32.totalorder %s51, %s65
      %p67 = scmp.eq.s32.totalorder %s20, 0
      %p68 = por %p66, %p67
      %s70 = sadd.s32 %s69, 1
      %p73 = scmp.eq.s32.totalorder %s14, 3
      %p74 = scmp.ne.s32.totalorder %s69, %s71
      %p75 = scmp.eq.s32.totalorder %s14, 0
      %p76 = por %p74, %p75
      %p77 = scmp.ne.s32.totalorder %s69, %s71
      %p78 = scmp.eq.s32.totalorder %s19, 3
      %p79 = por %p77, %p78
      %p80 = scmp.ne.s32.totalorder %s71, %s72
      %p81 = scmp.eq.s32.totalorder %s19, 0
      %p82 = por %p80, %p81
      %p83 = scmp.ne.s32.totalorder %s71, %s72
      %p84 = scmp.eq.s32.totalorder %s20, 3
      %p85 = por %p83, %p84
      %p87 = scmp.ne.s32.totalorder %s72, %s86
      %p88 = scmp.eq.s32.totalorder %s20, 0
      %p89 = por %p87, %p88
      %s91 = sadd.s32 %s90, 1
      %p94 = scmp.eq.s32.totalorder %s14, 3
      %p95 = scmp.ne.s32.totalorder %s90, %s92
      %p96 = scmp.eq.s32.totalorder %s14, 0
      %p97 = por %p95, %p96
      %p98 = scmp.ne.s32.totalorder %s90, %s92
      %p99 = scmp.eq.s32.totalorder %s19, 3
      %p100 = por %p98, %p99
      %p101 = scmp.ne.s32.totalorder %s92, %s93
      %p102 = scmp.eq.s32.totalorder %s19, 0
      %p103 = por %p101, %p102
      %p104 = scmp.ne.s32.totalorder %s92, %s93
      %p105 = scmp.eq.s32.totalorder %s20, 3
      %p106 = por %p104, %p105
      %p108 = scmp.ne.s32.totalorder %s93, %s107
      %p109 = scmp.eq.s32.totalorder %s20, 0
      %p110 = por %p108, %p109
      %p111 = scmp.le.s32.totalorder 1, %s14
      %p112 = scmp.lt.s32.totalorder %s14, 5
      %p113 = pnand %p111, %p112
      %p114 = pneg %p113
      // Predicated region
      $region9: #{tpu_custom_call.1} parent=5 // pred_check
        _
      $region10: #{tpu_custom_call.1} parent=5 // pred_check_branch
        %116 = sbr.rel (%p113) target = $region12
      $region11: #{tpu_custom_call.1} parent=5 // pred_region
        %s117 = ssub.s32 %s14, 1
        // Predicated region
        $region13: #{tpu_custom_call.1} parent=11 // pred_check
          %p118 = pneg %p61
        $region14: #{tpu_custom_call.1} parent=11 // pred_check_branch
          %120 = sbr.rel (%p118) target = $region16
        $region15: #{tpu_custom_call.1} parent=11 // pred_region
          %s122 = ssub.s32 1024, 1024
          %123 = vsyncadd [#allocation6], %s122
          %s124 = sshll.u32 [#allocation5], 4
          %s125 = int_to_ptr.vmem [resolvable:$true] %s124
          %130 = dma.hbm_to_vmem [thread:$0]  %s1, 1024, %s125, [#allocation6], 64, 64, 4
        $region16: #{tpu_custom_call.1} parent=11 // pred_fallthru
          _
        // Predicated region
        $region17: #{tpu_custom_call.1} parent=11 // pred_check
          %p131 = pneg %p82
        $region18: #{tpu_custom_call.1} parent=11 // pred_check_branch
          %133 = sbr.rel (%p131) target = $region20
        $region19: #{tpu_custom_call.1} parent=11 // pred_region
          %s135 = ssub.s32 128, 128
          %136 = vsyncadd [#allocation6], %s135
          %s138 = sshll.u32 [#allocation7], 4
          %s139 = int_to_ptr.vmem [resolvable:$true] %s138
          %141 = dma.hbm_to_vmem [thread:$0]  %s2, 128, %s139, [#allocation6]
        $region20: #{tpu_custom_call.1} parent=11 // pred_fallthru
          _
      $region12: #{tpu_custom_call.1} parent=5 // pred_fallthru
        _
      %p142 = scmp.lt.s32.totalorder %s14, 4
      // Predicated region
      $region21: #{tpu_custom_call.1} parent=5 // pred_check
        %p143 = pneg %p142
      $region22: #{tpu_custom_call.1} parent=5 // pred_check_branch
        %145 = sbr.rel (%p143) target = $region24
      $region23: #{tpu_custom_call.1} parent=5 // pred_region
        // Predicated region
        $region25: #{tpu_custom_call.1} parent=23 // pred_check
          %p146 = pneg %p34
        $region26: #{tpu_custom_call.1} parent=23 // pred_check_branch
          %148 = sbr.rel (%p146) target = $region28
        $region27: #{tpu_custom_call.1} parent=23 // pred_region
          %s149 = sand.u32 %s24, 1
          %s150 = scalar_lea.sflag [#allocation3], %s149
          %s151 = sand.u32 %s24, 1
          %s152 = smul.addr %s151, 8
          %s153 = scalar_lea.vmem [#allocation2], %s152
          %s154 = smul.u32 2, %s14
          %s156 = ssub.s32 128, 128
          %157 = vsyncadd %s150, %s156
          %s158 = smul.addr %s154, 64
          %s159 = scalar_lea.hbm %s0, %s158
          %s160 = sshll.u32 %s153, 4
          %s161 = int_to_ptr.vmem [resolvable:$true] %s160
          %166 = dma.hbm_to_vmem [thread:$0]  %s159, 128, %s161, %s150, 64, 64, 4
        $region28: #{tpu_custom_call.1} parent=23 // pred_fallthru
          _
      $region24: #{tpu_custom_call.1} parent=5 // pred_fallthru
        _
      %p167 = scmp.le.s32.totalorder 1, %s14
      %p168 = scmp.lt.s32.totalorder %s14, 5
      %p169 = pnand %p167, %p168
      %p170 = pneg %p169
      // Predicated region
      $region29: #{tpu_custom_call.1} parent=5 // pred_check
        _
      $region30: #{tpu_custom_call.1} parent=5 // pred_check_branch
        %172 = sbr.rel (%p169) target = $region32
      $region31: #{tpu_custom_call.1} parent=5 // pred_region
        %s173 = ssub.s32 %s14, 1
        %s174 = sand.u32 %s27, 1
        %s175 = scalar_lea.sflag [#allocation3], %s174
        %s176 = sand.u32 %s27, 1
        %s177 = smul.addr %s176, 8
        %s178 = scalar_lea.vmem [#allocation2], %s177
        // Predicated region
        $region33: #{tpu_custom_call.1} parent=31 // pred_check
          %p179 = pneg %p40
        $region34: #{tpu_custom_call.1} parent=31 // pred_check_branch
          %181 = sbr.rel (%p179) target = $region36
        $region35: #{tpu_custom_call.1} parent=31 // pred_region
          %182 = dma.done %s175, 128
        $region36: #{tpu_custom_call.1} parent=31 // pred_fallthru
          _
        // Predicated region
        $region37: #{tpu_custom_call.1} parent=31 // pred_check
          %p183 = pneg %p61
        $region38: #{tpu_custom_call.1} parent=31 // pred_check_branch
          %185 = sbr.rel (%p183) target = $region40
        $region39: #{tpu_custom_call.1} parent=31 // pred_region
          %186 = dma.done [#allocation6], 1024
        $region40: #{tpu_custom_call.1} parent=31 // pred_fallthru
          _
        // Predicated region
        $region41: #{tpu_custom_call.1} parent=31 // pred_check
          %p187 = pneg %p82
        $region42: #{tpu_custom_call.1} parent=31 // pred_check_branch
          %189 = sbr.rel (%p187) target = $region44
        $region43: #{tpu_custom_call.1} parent=31 // pred_region
          %190 = dma.done [#allocation6], 128
        $region44: #{tpu_custom_call.1} parent=31 // pred_fallthru
          _
        %s191 = sand.u32 %s27, 1
        %s192 = scalar_lea.sflag [#allocation3], %s191
        %s193 = sand.u32 %s27, 1
        %s194 = smul.addr %s193, 8
        %s195 = scalar_lea.vmem [#allocation2], %s194
        %p196 = pneg %p40
        %p197 = pneg %p37
        %p198 = pneg %p61
        %p199 = pneg %p58
        %p200 = pneg %p82
        %p201 = pneg %p79
        %p202 = pneg %p103
        %p203 = pneg %p100
        %s204 = smul.u32 2, %s19
        %p206 = scmp.eq.s32.totalorder %s19, 0
        // Predicated region
        $region45: #{tpu_custom_call.1} parent=31 // pred_check
          %p207 = pneg %p206
        $region46: #{tpu_custom_call.1} parent=31 // pred_check_branch
          %209 = sbr.rel (%p207) target = $region48
        $region47: #{tpu_custom_call.1} parent=31 // pred_region
          %210 = vst [vmem:[#allocation8] sm:$0xff] 0.0
        $region48: #{tpu_custom_call.1} parent=31 // pred_fallthru
          _
        %v211 = vld [vmem:[%s178] sm:$0xf]
        %v212 = vld [vmem:[%s178 + $0x4] sm:$0xf]
        %v213 = vld [vmem:[#allocation5] sm:$0xf]
        %v214 = vld [vmem:[#allocation5 + $0x4] sm:$0xf]
        %v215 = vld [vmem:[#allocation5 + $0x8] sm:$0xf]
        %v216 = vld [vmem:[#allocation5 + $0xc] sm:$0xf]
        %v217 = vld [vmem:[#allocation5 + $0x10] sm:$0xf]
        %v218 = vld [vmem:[#allocation5 + $0x14] sm:$0xf]
        %v219 = vld [vmem:[#allocation5 + $0x18] sm:$0xf]
        %v220 = vld [vmem:[#allocation5 + $0x1c] sm:$0xf]
        %v221 = vld [vmem:[#allocation5 + $0x20] sm:$0xf]
        %v222 = vld [vmem:[#allocation5 + $0x24] sm:$0xf]
        %v223 = vld [vmem:[#allocation5 + $0x28] sm:$0xf]
        %v224 = vld [vmem:[#allocation5 + $0x2c] sm:$0xf]
        %v225 = vld [vmem:[#allocation5 + $0x30] sm:$0xf]
        %v226 = vld [vmem:[#allocation5 + $0x34] sm:$0xf]
        %v227 = vld [vmem:[#allocation5 + $0x38] sm:$0xf]
        %v228 = vld [vmem:[#allocation5 + $0x3c] sm:$0xf]
        %v229 = vld [vmem:[#allocation7] sm:$0x1]
        %v230 = vlaneseq
        %v231 = vshrl.u32 %v230, 7
        %v232 = vsub.s32 0, %v231
        %v233 = vrot.slane %v229, %v232
        %v236 = vunpack.c.l.b16 %v211
        %v237 = vunpack.c.l.b16 %v212
        %v238 = vpack.c.b16 %v237, %v236
        %v256 = vunpack.c.l.b16 %v213
        %v257 = vunpack.c.l.b16 %v214
        %v258 = vunpack.c.l.b16 %v215
        %v259 = vunpack.c.l.b16 %v216
        %v260 = vunpack.c.l.b16 %v217
        %v261 = vunpack.c.l.b16 %v218
        %v262 = vunpack.c.l.b16 %v219
        %v263 = vunpack.c.l.b16 %v220
        %v264 = vunpack.c.l.b16 %v221
        %v265 = vunpack.c.l.b16 %v222
        %v266 = vunpack.c.l.b16 %v223
        %v267 = vunpack.c.l.b16 %v224
        %v268 = vunpack.c.l.b16 %v225
        %v269 = vunpack.c.l.b16 %v226
        %v270 = vunpack.c.l.b16 %v227
        %v271 = vunpack.c.l.b16 %v228
        %v272 = vpack.c.b16 %v257, %v256
        %v273 = vpack.c.b16 %v259, %v258
        %v274 = vpack.c.b16 %v261, %v260
        %v275 = vpack.c.b16 %v263, %v262
        %v276 = vpack.c.b16 %v265, %v264
        %v277 = vpack.c.b16 %v267, %v266
        %v278 = vpack.c.b16 %v269, %v268
        %v279 = vpack.c.b16 %v271, %v270
        %288 = vmatprep.subr.bf16.mxu0 0
        %289 = vmatpush1.bf16.msra.mxu0 %v272
        %290 = vmatprep.subr.bf16.mxu0 0
        %291 = vmatpush1.bf16.msra.mxu0 %v273
        %292 = vmatprep.subr.bf16.mxu0 0
        %293 = vmatpush1.bf16.msra.mxu0 %v274
        %294 = vmatprep.subr.bf16.mxu0 0
        %295 = vmatpush1.bf16.msra.mxu0 %v275
        %296 = vmatprep.subr.bf16.mxu0 0
        %297 = vmatpush1.bf16.msra.mxu0 %v276
        %298 = vmatprep.subr.bf16.mxu0 0
        %299 = vmatpush1.bf16.msra.mxu0 %v277
        %300 = vmatprep.subr.bf16.mxu0 0
        %301 = vmatpush1.bf16.msra.mxu0 %v278
        %302 = vmatprep.subr.bf16.mxu0 0
        %303 = vmatpush1.bf16.msra.mxu0 %v279
        %304 = vmatprep.subr.bf16.mxu0 0
        %305 = vmatpush1.bf16.msra.mxu0 0
        %306 = vmatprep.subr.bf16.mxu0 0
        %307 = vmatpush1.bf16.msra.mxu0 0
        %308 = vmatprep.subr.bf16.mxu0 0
        %309 = vmatpush1.bf16.msra.mxu0 0
        %310 = vmatprep.subr.bf16.mxu0 0
        %311 = vmatpush1.bf16.msra.mxu0 0
        %312 = vmatprep.subr.bf16.mxu0 0
        %313 = vmatpush1.bf16.msra.mxu0 0
        %314 = vmatprep.subr.bf16.mxu0 0
        %315 = vmatpush1.bf16.msra.mxu0 0
        %316 = vmatprep.subr.bf16.mxu0 0
        %317 = vmatpush1.bf16.msra.mxu0 0
        %318 = vmatprep.subr.bf16.mxu0 0
        %319 = vmatpush1.bf16.msra.mxu0 0
        %320 = vmatprep.mubr.bf16.mxu0 0
        %321 = vmatmul.mubr.bf16.gmra.mrb[0].mxu0 %v238
        %v322 = vpop.f32.mrb[0].mxu0
        %v323 = vadd.f32 %v233, %v322
        %v324 = vpop.f32.mrb[0].mxu0
        %v325 = vpop.f32.mrb[0].mxu0
        %v326 = vadd.f32 %v233, %v325
        %v327 = vpop.f32.mrb[0].mxu0
        %328 = vdwg.mxu0
        %v329 = vmax.f32 %v323, 0.0
        %v330 = vmax.f32 %v326, 0.0
        %v331 = vld [vmem:[#allocation8] sm:$0x1]
        %vm332 = vcmask 130048
        %v334 = vsel %vm332, 1.0, 0
        %336 = vmatprep.subr.mxu0 0.0
        %337 = vmatpush1.msra.mxu0 %v329
        %338 = vmatprep.subr.mxu0 0.0
        %339 = vmatpush1.msra.mxu0 %v330
        %340 = vmatprep.subr.mxu0 0.0
        %341 = vmatpush1.msra.mxu0 0.0
        %342 = vmatprep.subr.mxu0 0.0
        %343 = vmatpush1.msra.mxu0 0.0
        %344 = vmatprep.subr.mxu0 0.0
        %345 = vmatpush1.msra.mxu0 0.0
        %346 = vmatprep.subr.mxu0 0.0
        %347 = vmatpush1.msra.mxu0 0.0
        %348 = vmatprep.subr.mxu0 0.0
        %349 = vmatpush1.msra.mxu0 0.0
        %350 = vmatprep.subr.mxu0 0.0
        %351 = vmatpush1.msra.mxu0 0.0
        %352 = vmatprep.subr.mxu0 0.0
        %353 = vmatpush1.msra.mxu0 0.0
        %354 = vmatprep.subr.mxu0 0.0
        %355 = vmatpush1.msra.mxu0 0.0
        %356 = vmatprep.subr.mxu0 0.0
        %357 = vmatpush1.msra.mxu0 0.0
        %358 = vmatprep.subr.mxu0 0.0
        %359 = vmatpush1.msra.mxu0 0.0
        %360 = vmatprep.subr.mxu0 0.0
        %361 = vmatpush1.msra.mxu0 0.0
        %362 = vmatprep.subr.mxu0 0.0
        %363 = vmatpush1.msra.mxu0 0.0
        %364 = vmatprep.subr.mxu0 0.0
        %365 = vmatpush1.msra.mxu0 0.0
        %366 = vmatprep.subr.mxu0 0.0
        %367 = vmatpush1.msra.mxu0 0.0
        %368 = vmatprep.subr.mxu0 0.0
        %369 = vmatpush1.msra.mxu0 0.0
        %370 = vmatprep.subr.mxu0 0.0
        %371 = vmatpush1.msra.mxu0 0.0
        %372 = vmatprep.subr.mxu0 0.0
        %373 = vmatpush1.msra.mxu0 0.0
        %374 = vmatprep.subr.mxu0 0.0
        %375 = vmatpush1.msra.mxu0 0.0
        %376 = vmatprep.subr.mxu0 0.0
        %377 = vmatpush1.msra.mxu0 0.0
        %378 = vmatprep.subr.mxu0 0.0
        %379 = vmatpush1.msra.mxu0 0.0
        %380 = vmatprep.subr.mxu0 0.0
        %381 = vmatpush1.msra.mxu0 0.0
        %382 = vmatprep.subr.mxu0 0.0
        %383 = vmatpush1.msra.mxu0 0.0
        %384 = vmatprep.subr.mxu0 0.0
        %385 = vmatpush1.msra.mxu0 0.0
        %386 = vmatprep.subr.mxu0 0.0
        %387 = vmatpush1.msra.mxu0 0.0
        %388 = vmatprep.subr.mxu0 0.0
        %389 = vmatpush1.msra.mxu0 0.0
        %390 = vmatprep.subr.mxu0 0.0
        %391 = vmatpush1.msra.mxu0 0.0
        %392 = vmatprep.subr.mxu0 0.0
        %393 = vmatpush1.msra.mxu0 0.0
        %394 = vmatprep.subr.mxu0 0.0
        %395 = vmatpush1.msra.mxu0 0.0
        %396 = vmatprep.subr.mxu0 0.0
        %397 = vmatpush1.msra.mxu0 0.0
        %398 = vmatprep.subr.mxu0 0.0
        %399 = vmatpush1.msra.mxu0 0.0
        %400 = vmatprep.mubr.f32.mxu0 0.0
        %401 = vmatmul.mubr.f32.gmra.mrb[0].mxu0 %v334
        %v402 = vpop.f32.mrb[0].mxu0
        %v403 = vadd.f32 0.0, %v402
        %v404 = vpop.f32.mrb[0].mxu0
        %405 = vdwg.mxu0
        %v406 = vadd.f32 %v331, %v403
        %407 = vst [vmem:[#allocation8] sm:$0x1] %v406
        %v408 = vld [vmem:[#allocation8 + $0x1] sm:$0x1]
        %v409 = vmul.f32 %v329, %v329
        %v410 = vmul.f32 %v330, %v330
        %411 = vmatprep.subr.mxu0 0.0
        %412 = vmatpush1.msra.mxu0 %v409
        %413 = vmatprep.subr.mxu0 0.0
        %414 = vmatpush1.msra.mxu0 %v410
        %415 = vmatprep.subr.mxu0 0.0
        %416 = vmatpush1.msra.mxu0 0.0
        %417 = vmatprep.subr.mxu0 0.0
        %418 = vmatpush1.msra.mxu0 0.0
        %419 = vmatprep.subr.mxu0 0.0
        %420 = vmatpush1.msra.mxu0 0.0
        %421 = vmatprep.subr.mxu0 0.0
        %422 = vmatpush1.msra.mxu0 0.0
        %423 = vmatprep.subr.mxu0 0.0
        %424 = vmatpush1.msra.mxu0 0.0
        %425 = vmatprep.subr.mxu0 0.0
        %426 = vmatpush1.msra.mxu0 0.0
        %427 = vmatprep.subr.mxu0 0.0
        %428 = vmatpush1.msra.mxu0 0.0
        %429 = vmatprep.subr.mxu0 0.0
        %430 = vmatpush1.msra.mxu0 0.0
        %431 = vmatprep.subr.mxu0 0.0
        %432 = vmatpush1.msra.mxu0 0.0
        %433 = vmatprep.subr.mxu0 0.0
        %434 = vmatpush1.msra.mxu0 0.0
        %435 = vmatprep.subr.mxu0 0.0
        %436 = vmatpush1.msra.mxu0 0.0
        %437 = vmatprep.subr.mxu0 0.0
        %438 = vmatpush1.msra.mxu0 0.0
        %439 = vmatprep.subr.mxu0 0.0
        %440 = vmatpush1.msra.mxu0 0.0
        %441 = vmatprep.subr.mxu0 0.0
        %442 = vmatpush1.msra.mxu0 0.0
        %443 = vmatprep.subr.mxu0 0.0
        %444 = vmatpush1.msra.mxu0 0.0
        %445 = vmatprep.subr.mxu0 0.0
        %446 = vmatpush1.msra.mxu0 0.0
        %447 = vmatprep.subr.mxu0 0.0
        %448 = vmatpush1.msra.mxu0 0.0
        %449 = vmatprep.subr.mxu0 0.0
        %450 = vmatpush1.msra.mxu0 0.0
        %451 = vmatprep.subr.mxu0 0.0
        %452 = vmatpush1.msra.mxu0 0.0
        %453 = vmatprep.subr.mxu0 0.0
        %454 = vmatpush1.msra.mxu0 0.0
        %455 = vmatprep.subr.mxu0 0.0
        %456 = vmatpush1.msra.mxu0 0.0
        %457 = vmatprep.subr.mxu0 0.0
        %458 = vmatpush1.msra.mxu0 0.0
        %459 = vmatprep.subr.mxu0 0.0
        %460 = vmatpush1.msra.mxu0 0.0
        %461 = vmatprep.subr.mxu0 0.0
        %462 = vmatpush1.msra.mxu0 0.0
        %463 = vmatprep.subr.mxu0 0.0
        %464 = vmatpush1.msra.mxu0 0.0
        %465 = vmatprep.subr.mxu0 0.0
        %466 = vmatpush1.msra.mxu0 0.0
        %467 = vmatprep.subr.mxu0 0.0
        %468 = vmatpush1.msra.mxu0 0.0
        %469 = vmatprep.subr.mxu0 0.0
        %470 = vmatpush1.msra.mxu0 0.0
        %471 = vmatprep.subr.mxu0 0.0
        %472 = vmatpush1.msra.mxu0 0.0
        %473 = vmatprep.subr.mxu0 0.0
        %474 = vmatpush1.msra.mxu0 0.0
        %475 = vmatprep.mubr.f32.mxu0 0.0
        %476 = vmatmul.mubr.f32.gmra.mrb[0].mxu0 %v334
        %v477 = vpop.f32.mrb[0].mxu0
        %v478 = vadd.f32 0.0, %v477
        %v479 = vpop.f32.mrb[0].mxu0
        %480 = vdwg.mxu0
        %v481 = vadd.f32 %v408, %v478
        %482 = vst [vmem:[#allocation8 + $0x1] sm:$0x1] %v481
        // Predicated region
        $region49: #{tpu_custom_call.1} parent=31 // pred_check
          %p483 = pneg %p100
        $region50: #{tpu_custom_call.1} parent=31 // pred_check_branch
          %485 = sbr.rel (%p483) target = $region52
        $region51: #{tpu_custom_call.1} parent=31 // pred_region
          %s487 = ssub.s32 128, 128
          %488 = vsyncadd [#allocation4], %s487
          %s490 = sshll.u32 [#allocation8], 4
          %s491 = int_to_ptr.vmem [resolvable:$true] %s490
          %493 = dma.vmem_to_hbm [thread:$0]  %s491, 128, %s3, [#allocation4]
        $region52: #{tpu_custom_call.1} parent=31 // pred_fallthru
          _
        // Predicated region
        $region53: #{tpu_custom_call.1} parent=31 // pred_check
          %p494 = pneg %p100
        $region54: #{tpu_custom_call.1} parent=31 // pred_check_branch
          %496 = sbr.rel (%p494) target = $region56
        $region55: #{tpu_custom_call.1} parent=31 // pred_region
          %497 = dma.done [#allocation4], 128
        $region56: #{tpu_custom_call.1} parent=31 // pred_fallthru
          _
      $region32: #{tpu_custom_call.1} parent=5 // pred_fallthru
        _
      %p498 = scmp.le.s32.totalorder 2, %s14
      // Predicated region
      $region57: #{tpu_custom_call.1} parent=5 // pred_check
        %p499 = pneg %p498
      $region58: #{tpu_custom_call.1} parent=5 // pred_check_branch
        %501 = sbr.rel (%p499) target = $region60
      $region59: #{tpu_custom_call.1} parent=5 // pred_region
        %s502 = ssub.s32 %s14, 2
      $region60: #{tpu_custom_call.1} parent=5 // pred_fallthru
        _
    $region6: #{tpu_custom_call.1} parent=1 // loop_footer
      %s18 = sadd.s32 1, %s14
    $region7: #{tpu_custom_call.1} parent=1 // loop_footer_branch
      %13 = sbr.rel target = $region3
    $region8: #{tpu_custom_call.1} parent=1 // loop_exit
      _
    %503 = vsyncpa [#allocation3], 1
    %s504 = scalar_lea.sflag [#allocation3], 1
    %505 = vsyncpa %s504, 1
    %506 = vsyncpa [#allocation6], 1
    %507 = vsyncpa [#allocation4], 1
    %s508 = scalar_lea.sflag [#allocation4], 1
    %509 = vsyncpa %s508, 1

</llo_original>
